<compile_context>
chip_gen: v5e
topology: v5e:2x2
jax: 0.10.0
libtpu: 0.0.40
codegen_flags: <defaults>
</compile_context>

<pallas_src>
import functools
import math

import jax
import jax.numpy as jnp
from jax import lax
from jax.experimental import pallas as pl
from jax.experimental.pallas import tpu as pltpu


# ----------------------------- fused Pallas kernel -----------------------------

def _hgrn2_block_kernel(x_ref, an_w_ref, wqki_ref, gn_w_ref, wo_ref,
                        mn_w_ref, wgu_ref, wd_ref, o_ref, *,
                        H, Hkv, Dk, Dv, inter, scale, eps):
    x = x_ref[...].astype(jnp.float32)                      # (L, D)
    L = x.shape[0]

    def _rms(v, w_ref):
        ms = jnp.mean(v * v, axis=-1, keepdims=True)
        return v * lax.rsqrt(ms + eps) * w_ref[...].astype(jnp.float32)

    # ---- attn_norm ----
    h = _rms(x, an_w_ref)                                   # (L, D)

    # ---- fused q/k/i projection (single MXU dot) ----
    qki = jnp.dot(h, wqki_ref[...].astype(jnp.float32),
                  preferred_element_type=jnp.float32)       # (L, H*Dk + Hkv*Dk + Hkv*Dv)
    q_all = jnp.maximum(qki[:, :H * Dk], 0.0) * scale       # relu(q) * scale
    k_all = qki[:, H * Dk:H * Dk + Hkv * Dk]                # raw k (per KV head)
    v_all = qki[:, H * Dk + Hkv * Dk:]                      # i (values, per KV head)

    ks_all = jax.nn.sigmoid(k_all)
    # g = log(1 - sigmoid(k)) = -softplus(k)  (stable form)
    g_all = -(jnp.maximum(k_all, 0.0) + jnp.log(1.0 + jnp.exp(-jnp.abs(k_all))))

    # causal lower-triangular f32 matrix, built once and reused
    row = lax.broadcasted_iota(jnp.int32, (L, L), 0)
    col = lax.broadcasted_iota(jnp.int32, (L, L), 1)
    causal = (col <= row).astype(jnp.float32)               # (L, L)

    # inclusive cumulative sum of g over time via lower-triangular matmul (MXU)
    gcum = jnp.dot(causal, g_all, preferred_element_type=jnp.float32)   # (L, Hkv*Dk)
    eg = jnp.exp(gcum)
    inv_eg = pl.reciprocal(eg, approx=True)
    kt_all = ks_all * inv_eg

    # ---- per-head GLA (KV head shared via h // n_rep; no repeat_kv) ----
    n_rep = H // Hkv
    outs = []
    for hh in range(H):
        kv = hh // n_rep
        q_h = q_all[:, hh * Dk:(hh + 1) * Dk] * eg[:, kv * Dk:(kv + 1) * Dk]
        k_h = kt_all[:, kv * Dk:(kv + 1) * Dk]
        v_h = v_all[:, kv * Dv:(kv + 1) * Dv]
        sc = lax.dot_general(q_h, k_h, (((1,), (1,)), ((), ())),
                             preferred_element_type=jnp.float32)        # (L, L)
        sc = sc * causal
        outs.append(jnp.dot(sc, v_h, preferred_element_type=jnp.float32))
    o_slab = jnp.concatenate(outs, axis=-1)                 # (L, H*Dv) == (L, D), lane-dense

    # ---- g_norm + o_proj ----
    o2 = _rms(o_slab, gn_w_ref)
    attn_out = jnp.dot(o2, wo_ref[...].astype(jnp.float32),
                       preferred_element_type=jnp.float32)  # (L, D)

    # ---- mlp_norm (prenorm: residual = x + attn_out) ----
    res2 = attn_out + x
    h2 = _rms(res2, mn_w_ref)

    # ---- SwiGLU MLP (fused gate/up dot) + final residual ----
    gu = jnp.dot(h2, wgu_ref[...].astype(jnp.float32),
                 preferred_element_type=jnp.float32)        # (L, 2*inter)
    g = gu[:, :inter]
    u = gu[:, inter:]
    y = jnp.dot((g * jax.nn.sigmoid(g)) * u,
                wd_ref[...].astype(jnp.float32),
                preferred_element_type=jnp.float32)         # (L, D)
    o_ref[...] = (res2 + y).astype(o_ref.dtype)


# ----------------------------- wrapper -----------------------------

def hgrn2_block_forward(x, params, *, cfg):
    B, L, D = x.shape
    H, Hkv = cfg["num_heads"], cfg["num_kv_heads"]
    Dk, Dv = cfg["head_f_dim"], cfg["head_i_dim"]
    eps = cfg["norm_eps"]
    inter = params["w_gate"].shape[1]
    scale = Dk ** -0.5                                       # fla chunk_gla default scale

    # concatenate projection weights (one MXU dot for q/k/i, one for gate/up)
    w_qki = jnp.concatenate([params["wq"], params["wk"], params["wi"]], axis=1)
    w_gu = jnp.concatenate([params["w_gate"], params["w_up"]], axis=1)

    def _whole(shape):
        nd = len(shape)
        return pl.BlockSpec(shape, lambda b, nd=nd: (0,) * nd)

    kern = functools.partial(_hgrn2_block_kernel, H=H, Hkv=Hkv, Dk=Dk, Dv=Dv,
                             inter=inter, scale=scale, eps=eps)

    return pl.pallas_call(
        kern,
        out_shape=jax.ShapeDtypeStruct((B, L, D), x.dtype),
        grid=(B,),
        in_specs=[
            pl.BlockSpec((None, L, D), lambda b: (b, 0, 0)),   # x (one batch per step)
            _whole(params["attn_norm_w"].shape),
            _whole(w_qki.shape),
            _whole(params["g_norm_w"].shape),
            _whole(params["wo"].shape),
            _whole(params["mlp_norm_w"].shape),
            _whole(w_gu.shape),
            _whole(params["w_down"].shape),
        ],
        out_specs=pl.BlockSpec((None, L, D), lambda b: (b, 0, 0)),
        compiler_params=pltpu.CompilerParams(
            dimension_semantics=("parallel",)),
    )(x, params["attn_norm_w"], w_qki, params["g_norm_w"], params["wo"],
      params["mlp_norm_w"], w_gu, params["w_down"])


# ----------------------------- pure-JAX reference -----------------------------

def _ref_rmsnorm(x, w, eps):
    ms = jnp.mean(x * x, axis=-1, keepdims=True)
    return x * lax.rsqrt(ms + eps) * w


def _ref_gla_recurrent(q, k_raw, v, scale):
    q = jnp.maximum(q, 0.0) * scale
    ks = jax.nn.sigmoid(k_raw)
    decay = 1.0 - ks                                        # exp(log(1 - sigmoid(k)))
    B, H, L, Dk = q.shape
    Dv = v.shape[-1]

    def step(S, inp):
        qt, kt, dt, vt = inp
        S = S * dt[..., None] + kt[..., None] * vt[..., None, :]
        return S, jnp.einsum("bhk,bhkv->bhv", qt, S)

    S0 = jnp.zeros((B, H, Dk, Dv), jnp.float32)
    xs = (jnp.moveaxis(q, 2, 0), jnp.moveaxis(ks, 2, 0),
          jnp.moveaxis(decay, 2, 0), jnp.moveaxis(v, 2, 0))
    _, o = lax.scan(step, S0, xs)
    return jnp.moveaxis(o, 0, 2)


def hgrn2_block_reference(x, params, cfg):
    B, L, D = x.shape
    H, Hkv = cfg["num_heads"], cfg["num_kv_heads"]
    Dk, Dv = cfg["head_f_dim"], cfg["head_i_dim"]
    eps = cfg["norm_eps"]
    x2 = x.reshape(B * L, D)
    h = _ref_rmsnorm(x2, params["attn_norm_w"], eps)
    q = (h @ params["wq"]).reshape(B, L, H, Dk).transpose(0, 2, 1, 3)
    k = (h @ params["wk"]).reshape(B, L, Hkv, Dk).transpose(0, 2, 1, 3)
    i = (h @ params["wi"]).reshape(B, L, Hkv, Dv).transpose(0, 2, 1, 3)
    k = jnp.repeat(k, H // Hkv, axis=1)
    i = jnp.repeat(i, H // Hkv, axis=1)
    o = _ref_gla_recurrent(q, k, i, Dk ** -0.5)
    o2 = _ref_rmsnorm(o.transpose(0, 2, 1, 3).reshape(B * L, H * Dv),
                      params["g_norm_w"], eps)
    attn_out = o2 @ params["wo"]
    res2 = attn_out + x2
    h2 = _ref_rmsnorm(res2, params["mlp_norm_w"], eps)
    g = h2 @ params["w_gate"]
    u = h2 @ params["w_up"]
    y = (g * jax.nn.sigmoid(g) * u) @ params["w_down"]
    return (res2 + y).reshape(B, L, D)


# ----------------------------- main -----------------------------

if __name__ == "__main__":
    B, L, D = 2, 8, 32
    H, Hkv = 4, 2
    Dk = 16                   # expand_ratio == head_f_dim
    Dv = D // H               # head_i_dim
    inter = 64
    eps = 1e-6

    cfg = dict(num_heads=H, num_kv_heads=Hkv, head_f_dim=Dk, head_i_dim=Dv,
               norm_eps=eps)

    key = jax.random.PRNGKey(0)
    keys = jax.random.split(key, 8)

    def xavier(k, fin, fout, gain=2.0 ** -2.5):
        bound = gain * math.sqrt(6.0 / (fin + fout))
        return jax.random.uniform(k, (fin, fout), jnp.float32, -bound, bound)

    params = dict(
        attn_norm_w=jnp.ones((1, D), jnp.float32),     # RMSNorm weights init to ones
        g_norm_w=jnp.ones((1, D), jnp.float32),
        mlp_norm_w=jnp.ones((1, D), jnp.float32),
        wq=xavier(keys[0], D, H * Dk),
        wk=xavier(keys[1], D, Hkv * Dk),
        wi=xavier(keys[2], D, Hkv * Dv),
        wo=xavier(keys[3], D, D),
        w_gate=xavier(keys[4], D, inter),
        w_up=xavier(keys[5], D, inter),
        w_down=xavier(keys[6], inter, D),
    )
    x = jax.random.normal(keys[7], (B, L, D), jnp.float32)

    fwd = jax.jit(functools.partial(hgrn2_block_forward, cfg=cfg))
    out = fwd(x, params)
    jax.block_until_ready(out)

    ref = hgrn2_block_reference(x, params, cfg)
    assert out.shape == (B, L, D)
    assert jnp.allclose(out, ref, atol=2e-3, rtol=2e-3), \
        f"max diff {jnp.max(jnp.abs(out - ref))}"
    print("KERNEL_OK")
</pallas_src>

<mosaic_0001>
module attributes {stable_mosaic.version = 11 : i64} {
  func.func @_hgrn2_block_kernel(%arg0: i32, %arg1: memref<1x8x32xf32, #tpu.memory_space<vmem>>, %arg2: memref<1x32xf32, #tpu.memory_space<vmem>>, %arg3: memref<32x112xf32, #tpu.memory_space<vmem>>, %arg4: memref<1x32xf32, #tpu.memory_space<vmem>>, %arg5: memref<32x32xf32, #tpu.memory_space<vmem>>, %arg6: memref<1x32xf32, #tpu.memory_space<vmem>>, %arg7: memref<32x128xf32, #tpu.memory_space<vmem>>, %arg8: memref<64x32xf32, #tpu.memory_space<vmem>>, %arg9: memref<1x8x32xf32, #tpu.memory_space<vmem>>) attributes {dimension_semantics = [#tpu.dimension_semantics<parallel>], iteration_bounds = array<i64: 2>, scalar_prefetch = 0 : i64, scratch_operands = 0 : i64, tpu.core_type = #tpu.core_type<tc>, window_params = [{transform_indices = @transform_0, window_bounds = array<i64: 1, 8, 32>}, {pipeline_mode = #tpu.pipeline_mode<synchronous>, transform_indices = @transform_1, window_bounds = array<i64: 1, 32>}, {pipeline_mode = #tpu.pipeline_mode<synchronous>, transform_indices = @transform_2, window_bounds = array<i64: 32, 112>}, {pipeline_mode = #tpu.pipeline_mode<synchronous>, transform_indices = @transform_3, window_bounds = array<i64: 1, 32>}, {pipeline_mode = #tpu.pipeline_mode<synchronous>, transform_indices = @transform_4, window_bounds = array<i64: 32, 32>}, {pipeline_mode = #tpu.pipeline_mode<synchronous>, transform_indices = @transform_5, window_bounds = array<i64: 1, 32>}, {pipeline_mode = #tpu.pipeline_mode<synchronous>, transform_indices = @transform_6, window_bounds = array<i64: 32, 128>}, {pipeline_mode = #tpu.pipeline_mode<synchronous>, transform_indices = @transform_7, window_bounds = array<i64: 64, 32>}, {transform_indices = @transform_8, window_bounds = array<i64: 1, 8, 32>}]} {
    %c0 = arith.constant 0 : index
    %c0_0 = arith.constant 0 : index
    %c0_1 = arith.constant 0 : index
    %0 = vector.load %arg1[%c0, %c0_0, %c0_1] : memref<1x8x32xf32, #tpu.memory_space<vmem>>, vector<1x8x32xf32>
    %1 = vector.shape_cast %0 : vector<1x8x32xf32> to vector<8x32xf32>
    %2 = arith.mulf %1, %1 : vector<8x32xf32>
    %cst = arith.constant dense<0.000000e+00> : vector<8xf32>
    %3 = vector.multi_reduction <add>, %2, %cst [1] : vector<8x32xf32> to vector<8xf32>
    %4 = vector.shape_cast %3 : vector<8xf32> to vector<8x1xf32>
    %cst_2 = arith.constant 3.200000e+01 : f32
    %5 = vector.broadcast %cst_2 : f32 to vector<8x1xf32>
    %6 = arith.divf %4, %5 : vector<8x1xf32>
    %cst_3 = arith.constant 9.99999997E-7 : f32
    %7 = vector.broadcast %cst_3 : f32 to vector<8x1xf32>
    %8 = arith.addf %6, %7 : vector<8x1xf32>
    %9 = math.rsqrt %8 : vector<8x1xf32>
    %10 = vector.broadcast %9 : vector<8x1xf32> to vector<8x32xf32>
    %11 = arith.mulf %1, %10 : vector<8x32xf32>
    %c0_4 = arith.constant 0 : index
    %c0_5 = arith.constant 0 : index
    %12 = vector.load %arg2[%c0_4, %c0_5] : memref<1x32xf32, #tpu.memory_space<vmem>>, vector<1x32xf32>
    %13 = vector.broadcast %12 : vector<1x32xf32> to vector<8x32xf32>
    %14 = arith.mulf %11, %13 : vector<8x32xf32>
    %c0_6 = arith.constant 0 : index
    %c0_7 = arith.constant 0 : index
    %15 = vector.load %arg3[%c0_6, %c0_7] : memref<32x112xf32, #tpu.memory_space<vmem>>, vector<32x112xf32>
    %cst_8 = arith.constant dense<0.000000e+00> : vector<8x112xf32>
    %16 = tpu.matmul %14, %15, %cst_8 {dimension_numbers = #tpu.dot_dimension_numbers<[1], [0], [0], [1], [0, 0, 1, 1], [], []>} : vector<8x32xf32>, vector<32x112xf32>, vector<8x112xf32> -> vector<8x112xf32>
    %17 = vector.extract_strided_slice %16 {offsets = [0, 0], sizes = [8, 64], strides = [1, 1]} : vector<8x112xf32> to vector<8x64xf32>
    %cst_9 = arith.constant 0.000000e+00 : f32
    %18 = vector.broadcast %cst_9 : f32 to vector<8x64xf32>
    %19 = arith.maximumf %17, %18 : vector<8x64xf32>
    %cst_10 = arith.constant 2.500000e-01 : f32
    %20 = vector.broadcast %cst_10 : f32 to vector<8x64xf32>
    %21 = arith.mulf %19, %20 : vector<8x64xf32>
    %22 = vector.extract_strided_slice %16 {offsets = [0, 64], sizes = [8, 32], strides = [1, 1]} : vector<8x112xf32> to vector<8x32xf32>
    %23 = vector.extract_strided_slice %16 {offsets = [0, 96], sizes = [8, 16], strides = [1, 1]} : vector<8x112xf32> to vector<8x16xf32>
    %24 = arith.negf %22 : vector<8x32xf32>
    %25 = math.exp %24 : vector<8x32xf32>
    %cst_11 = arith.constant 1.000000e+00 : f32
    %26 = vector.broadcast %cst_11 : f32 to vector<8x32xf32>
    %27 = arith.addf %26, %25 : vector<8x32xf32>
    %28 = arith.divf %26, %27 : vector<8x32xf32>
    %cst_12 = arith.constant 0.000000e+00 : f32
    %29 = vector.broadcast %cst_12 : f32 to vector<8x32xf32>
    %30 = arith.maximumf %22, %29 : vector<8x32xf32>
    %31 = math.absf %22 : vector<8x32xf32>
    %cst_13 = arith.constant 0.000000e+00 : f32
    %32 = vector.broadcast %cst_13 : f32 to vector<8x32xf32>
    %33 = arith.subf %32, %31 : vector<8x32xf32>
    %34 = math.exp %33 : vector<8x32xf32>
    %cst_14 = arith.constant 1.000000e+00 : f32
    %35 = vector.broadcast %cst_14 : f32 to vector<8x32xf32>
    %36 = arith.addf %35, %34 : vector<8x32xf32>
    %37 = math.log %36 : vector<8x32xf32>
    %38 = arith.addf %30, %37 : vector<8x32xf32>
    %cst_15 = arith.constant 0.000000e+00 : f32
    %39 = vector.broadcast %cst_15 : f32 to vector<8x32xf32>
    %40 = arith.subf %39, %38 : vector<8x32xf32>
    %41 = tpu.iota {dimensions = array<i32: 0>} : vector<8x8xi32>
    %42 = tpu.iota {dimensions = array<i32: 1>} : vector<8x8xi32>
    %43 = arith.cmpi sle, %42, %41 : vector<8x8xi32>
    %44 = arith.extui %43 : vector<8x8xi1> to vector<8x8xi32>
    %45 = arith.sitofp %44 : vector<8x8xi32> to vector<8x8xf32>
    %cst_16 = arith.constant dense<0.000000e+00> : vector<8x32xf32>
    %46 = tpu.matmul %45, %40, %cst_16 {dimension_numbers = #tpu.dot_dimension_numbers<[1], [0], [0], [1], [0, 0, 1, 1], [], []>} : vector<8x8xf32>, vector<8x32xf32>, vector<8x32xf32> -> vector<8x32xf32>
    %47 = math.exp %46 : vector<8x32xf32>
    %48 = tpu.reciprocal %47 {approx = true} : vector<8x32xf32> -> vector<8x32xf32>
    %49 = arith.mulf %28, %48 : vector<8x32xf32>
    %50 = vector.extract_strided_slice %21 {offsets = [0, 0], sizes = [8, 16], strides = [1, 1]} : vector<8x64xf32> to vector<8x16xf32>
    %51 = vector.extract_strided_slice %47 {offsets = [0, 0], sizes = [8, 16], strides = [1, 1]} : vector<8x32xf32> to vector<8x16xf32>
    %52 = arith.mulf %50, %51 : vector<8x16xf32>
    %53 = vector.extract_strided_slice %49 {offsets = [0, 0], sizes = [8, 16], strides = [1, 1]} : vector<8x32xf32> to vector<8x16xf32>
    %54 = vector.extract_strided_slice %23 {offsets = [0, 0], sizes = [8, 8], strides = [1, 1]} : vector<8x16xf32> to vector<8x8xf32>
    %cst_17 = arith.constant dense<0.000000e+00> : vector<8x8xf32>
    %55 = tpu.matmul %52, %53, %cst_17 {dimension_numbers = #tpu.dot_dimension_numbers<[1], [1], [0], [0], [0, 0, 1, 0], [], []>} : vector<8x16xf32>, vector<8x16xf32>, vector<8x8xf32> -> vector<8x8xf32>
    %56 = arith.mulf %55, %45 : vector<8x8xf32>
    %cst_18 = arith.constant dense<0.000000e+00> : vector<8x8xf32>
    %57 = tpu.matmul %56, %54, %cst_18 {dimension_numbers = #tpu.dot_dimension_numbers<[1], [0], [0], [1], [0, 0, 1, 1], [], []>} : vector<8x8xf32>, vector<8x8xf32>, vector<8x8xf32> -> vector<8x8xf32>
    %58 = vector.extract_strided_slice %21 {offsets = [0, 16], sizes = [8, 16], strides = [1, 1]} : vector<8x64xf32> to vector<8x16xf32>
    %59 = vector.extract_strided_slice %47 {offsets = [0, 0], sizes = [8, 16], strides = [1, 1]} : vector<8x32xf32> to vector<8x16xf32>
    %60 = arith.mulf %58, %59 : vector<8x16xf32>
    %61 = vector.extract_strided_slice %49 {offsets = [0, 0], sizes = [8, 16], strides = [1, 1]} : vector<8x32xf32> to vector<8x16xf32>
    %62 = vector.extract_strided_slice %23 {offsets = [0, 0], sizes = [8, 8], strides = [1, 1]} : vector<8x16xf32> to vector<8x8xf32>
    %cst_19 = arith.constant dense<0.000000e+00> : vector<8x8xf32>
    %63 = tpu.matmul %60, %61, %cst_19 {dimension_numbers = #tpu.dot_dimension_numbers<[1], [1], [0], [0], [0, 0, 1, 0], [], []>} : vector<8x16xf32>, vector<8x16xf32>, vector<8x8xf32> -> vector<8x8xf32>
    %64 = arith.mulf %63, %45 : vector<8x8xf32>
    %cst_20 = arith.constant dense<0.000000e+00> : vector<8x8xf32>
    %65 = tpu.matmul %64, %62, %cst_20 {dimension_numbers = #tpu.dot_dimension_numbers<[1], [0], [0], [1], [0, 0, 1, 1], [], []>} : vector<8x8xf32>, vector<8x8xf32>, vector<8x8xf32> -> vector<8x8xf32>
    %66 = vector.extract_strided_slice %21 {offsets = [0, 32], sizes = [8, 16], strides = [1, 1]} : vector<8x64xf32> to vector<8x16xf32>
    %67 = vector.extract_strided_slice %47 {offsets = [0, 16], sizes = [8, 16], strides = [1, 1]} : vector<8x32xf32> to vector<8x16xf32>
    %68 = arith.mulf %66, %67 : vector<8x16xf32>
    %69 = vector.extract_strided_slice %49 {offsets = [0, 16], sizes = [8, 16], strides = [1, 1]} : vector<8x32xf32> to vector<8x16xf32>
    %70 = vector.extract_strided_slice %23 {offsets = [0, 8], sizes = [8, 8], strides = [1, 1]} : vector<8x16xf32> to vector<8x8xf32>
    %cst_21 = arith.constant dense<0.000000e+00> : vector<8x8xf32>
    %71 = tpu.matmul %68, %69, %cst_21 {dimension_numbers = #tpu.dot_dimension_numbers<[1], [1], [0], [0], [0, 0, 1, 0], [], []>} : vector<8x16xf32>, vector<8x16xf32>, vector<8x8xf32> -> vector<8x8xf32>
    %72 = arith.mulf %71, %45 : vector<8x8xf32>
    %cst_22 = arith.constant dense<0.000000e+00> : vector<8x8xf32>
    %73 = tpu.matmul %72, %70, %cst_22 {dimension_numbers = #tpu.dot_dimension_numbers<[1], [0], [0], [1], [0, 0, 1, 1], [], []>} : vector<8x8xf32>, vector<8x8xf32>, vector<8x8xf32> -> vector<8x8xf32>
    %74 = vector.extract_strided_slice %21 {offsets = [0, 48], sizes = [8, 16], strides = [1, 1]} : vector<8x64xf32> to vector<8x16xf32>
    %75 = vector.extract_strided_slice %47 {offsets = [0, 16], sizes = [8, 16], strides = [1, 1]} : vector<8x32xf32> to vector<8x16xf32>
    %76 = arith.mulf %74, %75 : vector<8x16xf32>
    %77 = vector.extract_strided_slice %49 {offsets = [0, 16], sizes = [8, 16], strides = [1, 1]} : vector<8x32xf32> to vector<8x16xf32>
    %78 = vector.extract_strided_slice %23 {offsets = [0, 8], sizes = [8, 8], strides = [1, 1]} : vector<8x16xf32> to vector<8x8xf32>
    %cst_23 = arith.constant dense<0.000000e+00> : vector<8x8xf32>
    %79 = tpu.matmul %76, %77, %cst_23 {dimension_numbers = #tpu.dot_dimension_numbers<[1], [1], [0], [0], [0, 0, 1, 0], [], []>} : vector<8x16xf32>, vector<8x16xf32>, vector<8x8xf32> -> vector<8x8xf32>
    %80 = arith.mulf %79, %45 : vector<8x8xf32>
    %cst_24 = arith.constant dense<0.000000e+00> : vector<8x8xf32>
    %81 = tpu.matmul %80, %78, %cst_24 {dimension_numbers = #tpu.dot_dimension_numbers<[1], [0], [0], [1], [0, 0, 1, 1], [], []>} : vector<8x8xf32>, vector<8x8xf32>, vector<8x8xf32> -> vector<8x8xf32>
    %82 = tpu.concatenate %57, %65, %73, %81 in 1 : vector<8x8xf32>, vector<8x8xf32>, vector<8x8xf32>, vector<8x8xf32> -> vector<8x32xf32>
    %83 = arith.mulf %82, %82 : vector<8x32xf32>
    %cst_25 = arith.constant dense<0.000000e+00> : vector<8xf32>
    %84 = vector.multi_reduction <add>, %83, %cst_25 [1] : vector<8x32xf32> to vector<8xf32>
    %85 = vector.shape_cast %84 : vector<8xf32> to vector<8x1xf32>
    %cst_26 = arith.constant 3.200000e+01 : f32
    %86 = vector.broadcast %cst_26 : f32 to vector<8x1xf32>
    %87 = arith.divf %85, %86 : vector<8x1xf32>
    %cst_27 = arith.constant 9.99999997E-7 : f32
    %88 = vector.broadcast %cst_27 : f32 to vector<8x1xf32>
    %89 = arith.addf %87, %88 : vector<8x1xf32>
    %90 = math.rsqrt %89 : vector<8x1xf32>
    %91 = vector.broadcast %90 : vector<8x1xf32> to vector<8x32xf32>
    %92 = arith.mulf %82, %91 : vector<8x32xf32>
    %c0_28 = arith.constant 0 : index
    %c0_29 = arith.constant 0 : index
    %93 = vector.load %arg4[%c0_28, %c0_29] : memref<1x32xf32, #tpu.memory_space<vmem>>, vector<1x32xf32>
    %94 = vector.broadcast %93 : vector<1x32xf32> to vector<8x32xf32>
    %95 = arith.mulf %92, %94 : vector<8x32xf32>
    %c0_30 = arith.constant 0 : index
    %c0_31 = arith.constant 0 : index
    %96 = vector.load %arg5[%c0_30, %c0_31] : memref<32x32xf32, #tpu.memory_space<vmem>>, vector<32x32xf32>
    %cst_32 = arith.constant dense<0.000000e+00> : vector<8x32xf32>
    %97 = tpu.matmul %95, %96, %cst_32 {dimension_numbers = #tpu.dot_dimension_numbers<[1], [0], [0], [1], [0, 0, 1, 1], [], []>} : vector<8x32xf32>, vector<32x32xf32>, vector<8x32xf32> -> vector<8x32xf32>
    %98 = arith.addf %97, %1 : vector<8x32xf32>
    %99 = arith.mulf %98, %98 : vector<8x32xf32>
    %cst_33 = arith.constant dense<0.000000e+00> : vector<8xf32>
    %100 = vector.multi_reduction <add>, %99, %cst_33 [1] : vector<8x32xf32> to vector<8xf32>
    %101 = vector.shape_cast %100 : vector<8xf32> to vector<8x1xf32>
    %cst_34 = arith.constant 3.200000e+01 : f32
    %102 = vector.broadcast %cst_34 : f32 to vector<8x1xf32>
    %103 = arith.divf %101, %102 : vector<8x1xf32>
    %cst_35 = arith.constant 9.99999997E-7 : f32
    %104 = vector.broadcast %cst_35 : f32 to vector<8x1xf32>
    %105 = arith.addf %103, %104 : vector<8x1xf32>
    %106 = math.rsqrt %105 : vector<8x1xf32>
    %107 = vector.broadcast %106 : vector<8x1xf32> to vector<8x32xf32>
    %108 = arith.mulf %98, %107 : vector<8x32xf32>
    %c0_36 = arith.constant 0 : index
    %c0_37 = arith.constant 0 : index
    %109 = vector.load %arg6[%c0_36, %c0_37] : memref<1x32xf32, #tpu.memory_space<vmem>>, vector<1x32xf32>
    %110 = vector.broadcast %109 : vector<1x32xf32> to vector<8x32xf32>
    %111 = arith.mulf %108, %110 : vector<8x32xf32>
    %c0_38 = arith.constant 0 : index
    %c0_39 = arith.constant 0 : index
    %112 = vector.load %arg7[%c0_38, %c0_39] : memref<32x128xf32, #tpu.memory_space<vmem>>, vector<32x128xf32>
    %cst_40 = arith.constant dense<0.000000e+00> : vector<8x128xf32>
    %113 = tpu.matmul %111, %112, %cst_40 {dimension_numbers = #tpu.dot_dimension_numbers<[1], [0], [0], [1], [0, 0, 1, 1], [], []>} : vector<8x32xf32>, vector<32x128xf32>, vector<8x128xf32> -> vector<8x128xf32>
    %114 = vector.extract_strided_slice %113 {offsets = [0, 0], sizes = [8, 64], strides = [1, 1]} : vector<8x128xf32> to vector<8x64xf32>
    %115 = vector.extract_strided_slice %113 {offsets = [0, 64], sizes = [8, 64], strides = [1, 1]} : vector<8x128xf32> to vector<8x64xf32>
    %116 = arith.negf %114 : vector<8x64xf32>
    %117 = math.exp %116 : vector<8x64xf32>
    %cst_41 = arith.constant 1.000000e+00 : f32
    %118 = vector.broadcast %cst_41 : f32 to vector<8x64xf32>
    %119 = arith.addf %118, %117 : vector<8x64xf32>
    %120 = arith.divf %118, %119 : vector<8x64xf32>
    %121 = arith.mulf %114, %120 : vector<8x64xf32>
    %122 = arith.mulf %121, %115 : vector<8x64xf32>
    %c0_42 = arith.constant 0 : index
    %c0_43 = arith.constant 0 : index
    %123 = vector.load %arg8[%c0_42, %c0_43] : memref<64x32xf32, #tpu.memory_space<vmem>>, vector<64x32xf32>
    %cst_44 = arith.constant dense<0.000000e+00> : vector<8x32xf32>
    %124 = tpu.matmul %122, %123, %cst_44 {dimension_numbers = #tpu.dot_dimension_numbers<[1], [0], [0], [1], [0, 0, 1, 1], [], []>} : vector<8x64xf32>, vector<64x32xf32>, vector<8x32xf32> -> vector<8x32xf32>
    %125 = arith.addf %98, %124 : vector<8x32xf32>
    %c0_45 = arith.constant 0 : index
    %c0_46 = arith.constant 0 : index
    %c0_47 = arith.constant 0 : index
    %126 = vector.load %arg9[%c0_45, %c0_46, %c0_47] : memref<1x8x32xf32, #tpu.memory_space<vmem>>, vector<1x8x32xf32>
    %127 = vector.shape_cast %126 : vector<1x8x32xf32> to vector<8x32xf32>
    %128 = vector.shape_cast %125 : vector<8x32xf32> to vector<1x8x32xf32>
    tpu.vector_store %arg9[%c0_45, %c0_46, %c0_47], %128 {strides = array<i32>} : memref<1x8x32xf32, #tpu.memory_space<vmem>>, vector<1x8x32xf32>,
    return
  }
  func.func @transform_0(%arg0: i32) -> (i32, i32, i32) {
    %c0_i32 = arith.constant 0 : i32
    %c0_i32_0 = arith.constant 0 : i32
    %c0_i32_1 = arith.constant 0 : i32
    return %arg0, %c0_i32, %c0_i32_0 : i32, i32, i32
  }
  func.func @transform_1(%arg0: i32) -> (i32, i32) {
    %c0_i32 = arith.constant 0 : i32
    %c0_i32_0 = arith.constant 0 : i32
    %c0_i32_1 = arith.constant 0 : i32
    return %c0_i32, %c0_i32_0 : i32, i32
  }
  func.func @transform_2(%arg0: i32) -> (i32, i32) {
    %c0_i32 = arith.constant 0 : i32
    %c0_i32_0 = arith.constant 0 : i32
    %c0_i32_1 = arith.constant 0 : i32
    return %c0_i32, %c0_i32_0 : i32, i32
  }
  func.func @transform_3(%arg0: i32) -> (i32, i32) {
    %c0_i32 = arith.constant 0 : i32
    %c0_i32_0 = arith.constant 0 : i32
    %c0_i32_1 = arith.constant 0 : i32
    return %c0_i32, %c0_i32_0 : i32, i32
  }
  func.func @transform_4(%arg0: i32) -> (i32, i32) {
    %c0_i32 = arith.constant 0 : i32
    %c0_i32_0 = arith.constant 0 : i32
    %c0_i32_1 = arith.constant 0 : i32
    return %c0_i32, %c0_i32_0 : i32, i32
  }
  func.func @transform_5(%arg0: i32) -> (i32, i32) {
    %c0_i32 = arith.constant 0 : i32
    %c0_i32_0 = arith.constant 0 : i32
    %c0_i32_1 = arith.constant 0 : i32
    return %c0_i32, %c0_i32_0 : i32, i32
  }
  func.func @transform_6(%arg0: i32) -> (i32, i32) {
    %c0_i32 = arith.constant 0 : i32
    %c0_i32_0 = arith.constant 0 : i32
    %c0_i32_1 = arith.constant 0 : i32
    return %c0_i32, %c0_i32_0 : i32, i32
  }
  func.func @transform_7(%arg0: i32) -> (i32, i32) {
    %c0_i32 = arith.constant 0 : i32
    %c0_i32_0 = arith.constant 0 : i32
    %c0_i32_1 = arith.constant 0 : i32
    return %c0_i32, %c0_i32_0 : i32, i32
  }
  func.func @transform_8(%arg0: i32) -> (i32, i32, i32) {
    %c0_i32 = arith.constant 0 : i32
    %c0_i32_0 = arith.constant 0 : i32
    %c0_i32_1 = arith.constant 0 : i32
    return %arg0, %c0_i32, %c0_i32_0 : i32, i32, i32
  }
}

</mosaic_0001>

<llo_original>
// kernel: hgrn2_block_forward.1
$region0: #{hgrn2_block_forward.1}
  #allocation0 [shape = 'u32[]', space=smem, size = 0x4, offset = 0x4, fixed_abs, tag = 'smem constant byte address 0x4 - core index']
  #allocation1 [shape = 'u32[72,128]{1,0:T(1,128)}', space=vmem, size = 0x9000, scoped, tag = 'internal scratch']
  %s0 = inlined_call_operand.vmem [shape: f32[2,8,32], index: 0, kind: input, shape index: {}]
  %s1 = inlined_call_operand.vmem [shape: f32[1,32], index: 1, kind: input, shape index: {}]
  %s2 = inlined_call_operand.vmem [shape: f32[32,112], index: 2, kind: input, shape index: {}]
  %s3 = inlined_call_operand.vmem [shape: f32[1,32], index: 3, kind: input, shape index: {}]
  %s4 = inlined_call_operand.vmem [shape: f32[32,32], index: 4, kind: input, shape index: {}]
  %s5 = inlined_call_operand.vmem [shape: f32[1,32], index: 5, kind: input, shape index: {}]
  %s6 = inlined_call_operand.vmem [shape: f32[32,128], index: 6, kind: input, shape index: {}]
  %s7 = inlined_call_operand.vmem [shape: f32[64,32], index: 7, kind: input, shape index: {}]
  %s8 = inlined_call_operand.hbm [shape: f32[2,8,32], index: 8, kind: output, shape index: {}]
  %s9 = sld [smem:[#allocation0]]
  $region65: #{hgrn2_block_forward.1} parent=0
    _
  %s11 = ssub.s32 1, %s9
  %s12 = scalar_select 0, %s11, %s9
  $region1: #{hgrn2_block_forward.1} parent=0
    #allocation2 [shape = 'u8[8192]{0}', space=vmem, size = 0x2000, scoped, tag = 'output window, operand 0']
    #allocation3 [shape = 's32[2]{0}', space=sflag, size = 0x8, scoped, tag = 'scoped memory for hgrn2_block_forward.1']
    %13 = vsyncpa [#allocation3], 0
    %s14 = scalar_lea.sflag [#allocation3], 1
    %15 = vsyncpa %s14, 0
    loop: start=0, step=1, limit=4
    $region2: #{hgrn2_block_forward.1} parent=1 // loop_pre_header
      _
    $region3: #{hgrn2_block_forward.1} parent=1 // loop_header
      %s17 = sphi 0, %s21
      %p18 = scmp.ge.s32.totalorder %s17, 4
      %s27 = sphi 0, %s29
      %s30 = sphi 0, %s27
      %s31 = sphi 0, %s30
      %s47 = sphi 0, %s31
      %s51 = sphi 0, %s51
      %s53 = sphi 0, %s51
      %s54 = sphi 0, %s53
      %s68 = sphi 0, %s54
      %s72 = sphi 0, %s72
      %s74 = sphi 0, %s72
      %s75 = sphi 0, %s74
      %s89 = sphi 0, %s75
      %s93 = sphi 0, %s93
      %s95 = sphi 0, %s93
      %s96 = sphi 0, %s95
      %s110 = sphi 0, %s96
      %s114 = sphi 0, %s114
      %s116 = sphi 0, %s114
      %s117 = sphi 0, %s116
      %s131 = sphi 0, %s117
      %s135 = sphi 0, %s135
      %s137 = sphi 0, %s135
      %s138 = sphi 0, %s137
      %s152 = sphi 0, %s138
      %s156 = sphi 0, %s156
      %s158 = sphi 0, %s156
      %s159 = sphi 0, %s158
      %s173 = sphi 0, %s159
      %s177 = sphi 0, %s177
      %s179 = sphi 0, %s177
      %s180 = sphi 0, %s179
      %s194 = sphi 0, %s180
      %s200 = sphi 0, %s202
      %s203 = sphi 0, %s200
      %s204 = sphi 0, %s203
      %s220 = sphi 0, %s204
    $region4: #{hgrn2_block_forward.1} parent=1 // loop_header_branch
      %20 = sbr.rel (%p18) target = $region8
    $region5: #{hgrn2_block_forward.1} parent=1 // loop_body
      %s22 = ssub.s32 %s17, 1
      %s23 = ssub.s32 %s17, 2
      %s24 = sadd.s32 %s17, 1
      %s25 = ssub.s32 %s17, %s24
      %p26 = scmp.eq.s32.totalorder %s25, 0
      %s28 = sadd.s32 %s27, 1
      %s29 = scalar_select %p26, %s27, %s28
      %p32 = pneg %p26
      %p33 = scmp.eq.s32.totalorder %s17, 1
      %p34 = por %p32, %p33
      %p35 = scmp.ne.s32.totalorder %s27, %s30
      %p36 = scmp.eq.s32.totalorder %s17, 0
      %p37 = por %p35, %p36
      %p38 = scmp.ne.s32.totalorder %s27, %s30
      %p39 = scmp.eq.s32.totalorder %s22, 1
      %p40 = por %p38, %p39
      %p41 = scmp.ne.s32.totalorder %s30, %s31
      %p42 = scmp.eq.s32.totalorder %s22, 0
      %p43 = por %p41, %p42
      %p44 = scmp.ne.s32.totalorder %s30, %s31
      %p45 = scmp.eq.s32.totalorder %s23, 1
      %p46 = por %p44, %p45
      %p48 = scmp.ne.s32.totalorder %s31, %s47
      %p49 = scmp.eq.s32.totalorder %s23, 0
      %p50 = por %p48, %p49
      %s52 = sadd.s32 %s51, 1
      %p55 = scmp.eq.s32.totalorder %s17, 1
      %p56 = scmp.ne.s32.totalorder %s51, %s53
      %p57 = scmp.eq.s32.totalorder %s17, 0
      %p58 = por %p56, %p57
      %p59 = scmp.ne.s32.totalorder %s51, %s53
      %p60 = scmp.eq.s32.totalorder %s22, 1
      %p61 = por %p59, %p60
      %p62 = scmp.ne.s32.totalorder %s53, %s54
      %p63 = scmp.eq.s32.totalorder %s22, 0
      %p64 = por %p62, %p63
      %p65 = scmp.ne.s32.totalorder %s53, %s54
      %p66 = scmp.eq.s32.totalorder %s23, 1
      %p67 = por %p65, %p66
      %p69 = scmp.ne.s32.totalorder %s54, %s68
      %p70 = scmp.eq.s32.totalorder %s23, 0
      %p71 = por %p69, %p70
      %s73 = sadd.s32 %s72, 1
      %p76 = scmp.eq.s32.totalorder %s17, 1
      %p77 = scmp.ne.s32.totalorder %s72, %s74
      %p78 = scmp.eq.s32.totalorder %s17, 0
      %p79 = por %p77, %p78
      %p80 = scmp.ne.s32.totalorder %s72, %s74
      %p81 = scmp.eq.s32.totalorder %s22, 1
      %p82 = por %p80, %p81
      %p83 = scmp.ne.s32.totalorder %s74, %s75
      %p84 = scmp.eq.s32.totalorder %s22, 0
      %p85 = por %p83, %p84
      %p86 = scmp.ne.s32.totalorder %s74, %s75
      %p87 = scmp.eq.s32.totalorder %s23, 1
      %p88 = por %p86, %p87
      %p90 = scmp.ne.s32.totalorder %s75, %s89
      %p91 = scmp.eq.s32.totalorder %s23, 0
      %p92 = por %p90, %p91
      %s94 = sadd.s32 %s93, 1
      %p97 = scmp.eq.s32.totalorder %s17, 1
      %p98 = scmp.ne.s32.totalorder %s93, %s95
      %p99 = scmp.eq.s32.totalorder %s17, 0
      %p100 = por %p98, %p99
      %p101 = scmp.ne.s32.totalorder %s93, %s95
      %p102 = scmp.eq.s32.totalorder %s22, 1
      %p103 = por %p101, %p102
      %p104 = scmp.ne.s32.totalorder %s95, %s96
      %p105 = scmp.eq.s32.totalorder %s22, 0
      %p106 = por %p104, %p105
      %p107 = scmp.ne.s32.totalorder %s95, %s96
      %p108 = scmp.eq.s32.totalorder %s23, 1
      %p109 = por %p107, %p108
      %p111 = scmp.ne.s32.totalorder %s96, %s110
      %p112 = scmp.eq.s32.totalorder %s23, 0
      %p113 = por %p111, %p112
      %s115 = sadd.s32 %s114, 1
      %p118 = scmp.eq.s32.totalorder %s17, 1
      %p119 = scmp.ne.s32.totalorder %s114, %s116
      %p120 = scmp.eq.s32.totalorder %s17, 0
      %p121 = por %p119, %p120
      %p122 = scmp.ne.s32.totalorder %s114, %s116
      %p123 = scmp.eq.s32.totalorder %s22, 1
      %p124 = por %p122, %p123
      %p125 = scmp.ne.s32.totalorder %s116, %s117
      %p126 = scmp.eq.s32.totalorder %s22, 0
      %p127 = por %p125, %p126
      %p128 = scmp.ne.s32.totalorder %s116, %s117
      %p129 = scmp.eq.s32.totalorder %s23, 1
      %p130 = por %p128, %p129
      %p132 = scmp.ne.s32.totalorder %s117, %s131
      %p133 = scmp.eq.s32.totalorder %s23, 0
      %p134 = por %p132, %p133
      %s136 = sadd.s32 %s135, 1
      %p139 = scmp.eq.s32.totalorder %s17, 1
      %p140 = scmp.ne.s32.totalorder %s135, %s137
      %p141 = scmp.eq.s32.totalorder %s17, 0
      %p142 = por %p140, %p141
      %p143 = scmp.ne.s32.totalorder %s135, %s137
      %p144 = scmp.eq.s32.totalorder %s22, 1
      %p145 = por %p143, %p144
      %p146 = scmp.ne.s32.totalorder %s137, %s138
      %p147 = scmp.eq.s32.totalorder %s22, 0
      %p148 = por %p146, %p147
      %p149 = scmp.ne.s32.totalorder %s137, %s138
      %p150 = scmp.eq.s32.totalorder %s23, 1
      %p151 = por %p149, %p150
      %p153 = scmp.ne.s32.totalorder %s138, %s152
      %p154 = scmp.eq.s32.totalorder %s23, 0
      %p155 = por %p153, %p154
      %s157 = sadd.s32 %s156, 1
      %p160 = scmp.eq.s32.totalorder %s17, 1
      %p161 = scmp.ne.s32.totalorder %s156, %s158
      %p162 = scmp.eq.s32.totalorder %s17, 0
      %p163 = por %p161, %p162
      %p164 = scmp.ne.s32.totalorder %s156, %s158
      %p165 = scmp.eq.s32.totalorder %s22, 1
      %p166 = por %p164, %p165
      %p167 = scmp.ne.s32.totalorder %s158, %s159
      %p168 = scmp.eq.s32.totalorder %s22, 0
      %p169 = por %p167, %p168
      %p170 = scmp.ne.s32.totalorder %s158, %s159
      %p171 = scmp.eq.s32.totalorder %s23, 1
      %p172 = por %p170, %p171
      %p174 = scmp.ne.s32.totalorder %s159, %s173
      %p175 = scmp.eq.s32.totalorder %s23, 0
      %p176 = por %p174, %p175
      %s178 = sadd.s32 %s177, 1
      %p181 = scmp.eq.s32.totalorder %s17, 1
      %p182 = scmp.ne.s32.totalorder %s177, %s179
      %p183 = scmp.eq.s32.totalorder %s17, 0
      %p184 = por %p182, %p183
      %p185 = scmp.ne.s32.totalorder %s177, %s179
      %p186 = scmp.eq.s32.totalorder %s22, 1
      %p187 = por %p185, %p186
      %p188 = scmp.ne.s32.totalorder %s179, %s180
      %p189 = scmp.eq.s32.totalorder %s22, 0
      %p190 = por %p188, %p189
      %p191 = scmp.ne.s32.totalorder %s179, %s180
      %p192 = scmp.eq.s32.totalorder %s23, 1
      %p193 = por %p191, %p192
      %p195 = scmp.ne.s32.totalorder %s180, %s194
      %p196 = scmp.eq.s32.totalorder %s23, 0
      %p197 = por %p195, %p196
      %s198 = ssub.s32 %s17, %s24
      %p199 = scmp.eq.s32.totalorder %s198, 0
      %s201 = sadd.s32 %s200, 1
      %s202 = scalar_select %p199, %s200, %s201
      %p205 = pneg %p199
      %p206 = scmp.eq.s32.totalorder %s17, 1
      %p207 = por %p205, %p206
      %p208 = scmp.ne.s32.totalorder %s200, %s203
      %p209 = scmp.eq.s32.totalorder %s17, 0
      %p210 = por %p208, %p209
      %p211 = scmp.ne.s32.totalorder %s200, %s203
      %p212 = scmp.eq.s32.totalorder %s22, 1
      %p213 = por %p211, %p212
      %p214 = scmp.ne.s32.totalorder %s203, %s204
      %p215 = scmp.eq.s32.totalorder %s22, 0
      %p216 = por %p214, %p215
      %p217 = scmp.ne.s32.totalorder %s203, %s204
      %p218 = scmp.eq.s32.totalorder %s23, 1
      %p219 = por %p217, %p218
      %p221 = scmp.ne.s32.totalorder %s204, %s220
      %p222 = scmp.eq.s32.totalorder %s23, 0
      %p223 = por %p221, %p222
      %p224 = scmp.le.s32.totalorder 1, %s17
      %p225 = scmp.lt.s32.totalorder %s17, 3
      %p226 = pnand %p224, %p225
      %p227 = pneg %p226
      // Predicated region
      $region9: #{hgrn2_block_forward.1} parent=5 // pred_check
        _
      $region10: #{hgrn2_block_forward.1} parent=5 // pred_check_branch
        %229 = sbr.rel (%p226) target = $region12
      $region11: #{hgrn2_block_forward.1} parent=5 // pred_region
        %s230 = ssub.s32 %s17, 1
        // Predicated region
        $region13: #{hgrn2_block_forward.1} parent=11 // pred_check
          %p231 = pneg %p64
        $region14: #{hgrn2_block_forward.1} parent=11 // pred_check_branch
          %233 = sbr.rel (%p231) target = $region16
        $region15: #{hgrn2_block_forward.1} parent=11 // pred_region
          _
        $region16: #{hgrn2_block_forward.1} parent=11 // pred_fallthru
          _
        // Predicated region
        $region17: #{hgrn2_block_forward.1} parent=11 // pred_check
          %p234 = pneg %p85
        $region18: #{hgrn2_block_forward.1} parent=11 // pred_check_branch
          %236 = sbr.rel (%p234) target = $region20
        $region19: #{hgrn2_block_forward.1} parent=11 // pred_region
          _
        $region20: #{hgrn2_block_forward.1} parent=11 // pred_fallthru
          _
        // Predicated region
        $region21: #{hgrn2_block_forward.1} parent=11 // pred_check
          %p237 = pneg %p106
        $region22: #{hgrn2_block_forward.1} parent=11 // pred_check_branch
          %239 = sbr.rel (%p237) target = $region24
        $region23: #{hgrn2_block_forward.1} parent=11 // pred_region
          _
        $region24: #{hgrn2_block_forward.1} parent=11 // pred_fallthru
          _
        // Predicated region
        $region25: #{hgrn2_block_forward.1} parent=11 // pred_check
          %p240 = pneg %p127
        $region26: #{hgrn2_block_forward.1} parent=11 // pred_check_branch
          %242 = sbr.rel (%p240) target = $region28
        $region27: #{hgrn2_block_forward.1} parent=11 // pred_region
          _
        $region28: #{hgrn2_block_forward.1} parent=11 // pred_fallthru
          _
        // Predicated region
        $region29: #{hgrn2_block_forward.1} parent=11 // pred_check
          %p243 = pneg %p148
        $region30: #{hgrn2_block_forward.1} parent=11 // pred_check_branch
          %245 = sbr.rel (%p243) target = $region32
        $region31: #{hgrn2_block_forward.1} parent=11 // pred_region
          _
        $region32: #{hgrn2_block_forward.1} parent=11 // pred_fallthru
          _
        // Predicated region
        $region33: #{hgrn2_block_forward.1} parent=11 // pred_check
          %p246 = pneg %p169
        $region34: #{hgrn2_block_forward.1} parent=11 // pred_check_branch
          %248 = sbr.rel (%p246) target = $region36
        $region35: #{hgrn2_block_forward.1} parent=11 // pred_region
          _
        $region36: #{hgrn2_block_forward.1} parent=11 // pred_fallthru
          _
        // Predicated region
        $region37: #{hgrn2_block_forward.1} parent=11 // pred_check
          %p249 = pneg %p190
        $region38: #{hgrn2_block_forward.1} parent=11 // pred_check_branch
          %251 = sbr.rel (%p249) target = $region40
        $region39: #{hgrn2_block_forward.1} parent=11 // pred_region
          _
        $region40: #{hgrn2_block_forward.1} parent=11 // pred_fallthru
          _
      $region12: #{hgrn2_block_forward.1} parent=5 // pred_fallthru
        _
      %p252 = scmp.lt.s32.totalorder %s17, 2
      // Predicated region
      $region41: #{hgrn2_block_forward.1} parent=5 // pred_check
        %p253 = pneg %p252
      $region42: #{hgrn2_block_forward.1} parent=5 // pred_check_branch
        %255 = sbr.rel (%p253) target = $region44
      $region43: #{hgrn2_block_forward.1} parent=5 // pred_region
        // Predicated region
        $region45: #{hgrn2_block_forward.1} parent=43 // pred_check
          %p256 = pneg %p37
        $region46: #{hgrn2_block_forward.1} parent=43 // pred_check_branch
          %258 = sbr.rel (%p256) target = $region48
        $region47: #{hgrn2_block_forward.1} parent=43 // pred_region
          %p259 = scmp.lt.s32.totalorder %s17, 1
          %s260 = scalar_select %p259, %s17, 1
          %s261 = smul.addr %s260, 8
          %s262 = scalar_lea.vmem %s0, %s261
        $region48: #{hgrn2_block_forward.1} parent=43 // pred_fallthru
          _
      $region44: #{hgrn2_block_forward.1} parent=5 // pred_fallthru
        _
      %p263 = scmp.le.s32.totalorder 1, %s17
      %p264 = scmp.lt.s32.totalorder %s17, 3
      %p265 = pnand %p263, %p264
      %p266 = pneg %p265
      // Predicated region
      $region49: #{hgrn2_block_forward.1} parent=5 // pred_check
        _
      $region50: #{hgrn2_block_forward.1} parent=5 // pred_check_branch
        %268 = sbr.rel (%p265) target = $region52
      $region51: #{hgrn2_block_forward.1} parent=5 // pred_region
        %s269 = ssub.s32 %s17, 1
        %p270 = scmp.lt.s32.totalorder %s22, 1
        %s271 = scalar_select %p270, %s22, 1
        %s272 = smul.addr %s271, 8
        %s273 = scalar_lea.vmem %s0, %s272
        %p274 = pneg %p43
        %p275 = pneg %p40
        %p276 = pneg %p64
        %p277 = pneg %p61
        %p278 = pneg %p85
        %p279 = pneg %p82
        %p280 = pneg %p106
        %p281 = pneg %p103
        %p282 = pneg %p127
        %p283 = pneg %p124
        %p284 = pneg %p148
        %p285 = pneg %p145
        %p286 = pneg %p169
        %p287 = pneg %p166
        %p288 = pneg %p190
        %p289 = pneg %p187
        %p290 = pneg %p216
        %p291 = pneg %p213
        %s292 = sand.u32 %s203, 1
        %s293 = scalar_lea.sflag [#allocation3], %s292
        %s294 = sand.u32 %s203, 1
        %s295 = smul.addr %s294, 8
        %s296 = scalar_lea.vmem [#allocation2], %s295
        %p297 = scmp.lt.s32.totalorder %s22, 1
        %s298 = scalar_select %p297, %s22, 1
        %s299 = smul.addr %s298, 8
        %s300 = scalar_lea.vmem %s0, %s299
        %v301 = vld [vmem:[%s300] sm:$0xff]
        %v302 = vmul.f32 %v301, %v301
        %vm303 = vcmask 261120
        %v304 = vsel %vm303, %v302, 0.0
        %305 = vadd.xlane.f32.xlu0 %v304
        %v306 = vpop.xlane.xlu0 %305
        %v307 = vrcp.pop 32.0
        %v308 = vmul.f32 32.0, %v307
        %v309 = vsub.f32 1.0, %v308
        %v310 = vmul.f32 %v307, %v309
        %v311 = vadd.f32 %v307, %v310
        %vm312 = vweird.f32 %v307
        %v313 = vsel %vm312, %v307, %v311
        %v314 = vmul.f32 %v306, %v313
        %v315 = vadd.f32 %v314, 1e-06
        %v316 = vrsqrt.pop %v315
        %v317 = vmul.f32 %v316, %v315
        %v318 = vmul.f32 %v317, %v316
        %v319 = vmul.f32 0.5, %v318
        %v320 = vsub.f32 1.5, %v319
        %v321 = vmul.f32 %v316, %v320
        %vm322 = vweird.f32 %v315
        %vm323 = vweird.f32 %v316
        %vm324 = vmor %vm322, %vm323
        %v325 = vsel %vm324, %v316, %v321
        %v326 = vmul.f32 %v301, %v325
        %v327 = vld [vmem:[%s1] sm:$0x1]
        %v329 = vperm.slane %v327, 0
        %v331 = vmul.f32 %v326, %v329
        %v332 = vld [vmem:[%s2] sm:$0xff]
        %v333 = vld [vmem:[%s2 + $0x8] sm:$0xff]
        %v334 = vld [vmem:[%s2 + $0x10] sm:$0xff]
        %v335 = vld [vmem:[%s2 + $0x18] sm:$0xff]
        %v337 = vsel %vm303, %v331, 0
        %339 = vmatpush.msra.mxu0 0.0
        %340 = vmatpush.msra.mxu0 0.0
        %341 = vmatpush.msra.mxu0 0.0
        %342 = vmatpush.msra.mxu0 0.0
        %343 = vmatpush.msra.mxu0 0.0
        %344 = vmatpush.msra.mxu0 0.0
        %345 = vmatpush.msra.mxu0 0.0
        %346 = vmatpush.msra.mxu0 0.0
        %347 = vmatpush.msra.mxu0 0.0
        %348 = vmatpush.msra.mxu0 0.0
        %349 = vmatpush.msra.mxu0 0.0
        %350 = vmatpush.msra.mxu0 0.0
        %351 = vmatpush.msra.mxu0 %v335
        %352 = vmatpush.msra.mxu0 %v334
        %353 = vmatpush.msra.mxu0 %v333
        %354 = vmatpush.msra.mxu0 %v332
        %355 = vmatmul.f32.gmra.mxu0 %v337
        %v356 = vpop.f32.mrf.mxu0
        %v357 = vadd.f32 0.0, %v356
        %358 = vdwg.mxu0
        %v359 = vmax.f32 %v357, 0.0
        %v360 = vmul.f32 %v359, 0.25
        %v361 = vxor.u32 %v357, 2147483648
        %v362 = vmul.f32 %v361, 1.442695
        %v363 = vpow.pop %v362
        %v364 = vadd.f32 %v363, 1.0
        %v365 = vrcp.pop %v364
        %v366 = vmul.f32 %v364, %v365
        %v367 = vsub.f32 1.0, %v366
        %v368 = vmul.f32 %v365, %v367
        %v369 = vadd.f32 %v365, %v368
        %vm370 = vweird.f32 %v364
        %vm371 = vweird.f32 %v365
        %vm372 = vmor %vm370, %vm371
        %v373 = vsel %vm372, %v365, %v369
        %v374 = vand.u32 2147483647, %v364
        %vm375 = vcmp.eq.f32.partialorder %v374, 8.507059e+37
        %v376 = vand.u32 %v364, 2147483648
        %v377 = vor.u32 1.1754944e-38, %v376
        %v378 = vsel %vm375, %v377, %v373
        %v379 = vmul.f32 1.0, %v378
        %v380 = vand.u32 2147483647, %v357
        %v381 = vsub.f32 0.0, %v380
        %v382 = vmul.f32 %v381, 1.442695
        %v383 = vpow.pop %v382
        %v384 = vadd.f32 %v383, 1.0
        %v385 = vlog2.pop %v384
        %v386 = vmul.f32 %v385, 0.6931472
        %v387 = vadd.f32 %v359, %v386
        %v388 = vsub.f32 0.0, %v387
        %v389 = vlaneseq
        %v390 = vshrl.u32 %v389, 7
        %v391 = vlaneseq
        %v392 = vand.u32 %v391, 127
        %vm393 = vcmp.le.s32.totalorder %v392, %v390
        %v394 = vsel %vm393, 1, 0
        %v395 = vcvt.s32.f32 %v394
        %397 = vrot.lane.b32.xlu0 %v388, 64
        %v398 = vpop.permute.xlu0 %397
        %vm400 = vcmask 64512
        %v402 = vsel %vm400, %v395, 0
        %404 = vmatpush.msra.mxu0 0.0
        %405 = vmatpush.msra.mxu0 0.0
        %406 = vmatpush.msra.mxu0 0.0
        %407 = vmatpush.msra.mxu0 0.0
        %408 = vmatpush.msra.mxu0 0.0
        %409 = vmatpush.msra.mxu0 0.0
        %410 = vmatpush.msra.mxu0 0.0
        %411 = vmatpush.msra.mxu0 0.0
        %412 = vmatpush.msra.mxu0 0.0
        %413 = vmatpush.msra.mxu0 0.0
        %414 = vmatpush.msra.mxu0 0.0
        %415 = vmatpush.msra.mxu0 0.0
        %416 = vmatpush.msra.mxu0 0.0
        %417 = vmatpush.msra.mxu0 0.0
        %418 = vmatpush.msra.mxu0 0.0
        %419 = vmatpush.msra.mxu0 %v398
        %420 = vmatmul.f32.gmra.mxu0 %v402
        %v421 = vpop.f32.mrf.mxu0
        %v422 = vadd.f32 0.0, %v421
        %423 = vdwg.mxu0
        %v424 = vmul.f32 %v422, 1.442695
        %v425 = vpow.pop %v424
        %v426 = vrcp.pop %v425
        %428 = vrot.lane.b32.xlu0 %v426, 64
        %v429 = vpop.permute.xlu0 %428
        %v431 = vmul.f32 %v379, %v429
        %v432 = vmul.f32 %v360, %v425
        %434 = vrot.lane.b32.xlu0 %v431, 64
        %v435 = vpop.permute.xlu0 %434
        %vm436 = vcmask 130048
        %v438 = vsel %vm436, %v432, 0
        %v440 = vsel %vm436, %v435, 0
        %442 = vmatpush.xpose.msra.mxu0 0.0
        %443 = vmatpush.xpose.msra.mxu0 0.0
        %444 = vmatpush.xpose.msra.mxu0 0.0
        %445 = vmatpush.xpose.msra.mxu0 0.0
        %446 = vmatpush.xpose.msra.mxu0 0.0
        %447 = vmatpush.xpose.msra.mxu0 0.0
        %448 = vmatpush.xpose.msra.mxu0 0.0
        %449 = vmatpush.xpose.msra.mxu0 0.0
        %450 = vmatpush.xpose.msra.mxu0 0.0
        %451 = vmatpush.xpose.msra.mxu0 0.0
        %452 = vmatpush.xpose.msra.mxu0 0.0
        %453 = vmatpush.xpose.msra.mxu0 0.0
        %454 = vmatpush.xpose.msra.mxu0 0.0
        %455 = vmatpush.xpose.msra.mxu0 0.0
        %456 = vmatpush.xpose.msra.mxu0 0.0
        %457 = vmatpush.xpose.msra.mxu0 %v440
        %458 = vmatmul.f32.gmra.mxu0 %v438
        %v459 = vpop.f32.mrf.mxu0
        %v460 = vadd.f32 0.0, %v459
        %461 = vdwg.mxu0
        %v462 = vmul.f32 %v460, %v395
        %464 = vrot.lane.b32.xlu0 %v357, 32
        %v465 = vpop.permute.xlu0 %464
        %v468 = vsel %vm400, %v462, 0
        %470 = vmatpush.msra.mxu0 0.0
        %471 = vmatpush.msra.mxu0 0.0
        %472 = vmatpush.msra.mxu0 0.0
        %473 = vmatpush.msra.mxu0 0.0
        %474 = vmatpush.msra.mxu0 0.0
        %475 = vmatpush.msra.mxu0 0.0
        %476 = vmatpush.msra.mxu0 0.0
        %477 = vmatpush.msra.mxu0 0.0
        %478 = vmatpush.msra.mxu0 0.0
        %479 = vmatpush.msra.mxu0 0.0
        %480 = vmatpush.msra.mxu0 0.0
        %481 = vmatpush.msra.mxu0 0.0
        %482 = vmatpush.msra.mxu0 0.0
        %483 = vmatpush.msra.mxu0 0.0
        %484 = vmatpush.msra.mxu0 0.0
        %485 = vmatpush.msra.mxu0 %v465
        %486 = vmatmul.f32.gmra.mxu0 %v468
        %v487 = vpop.f32.mrf.mxu0
        %v488 = vadd.f32 0.0, %v487
        %489 = vdwg.mxu0
        %491 = vrot.lane.b32.xlu0 %v425, 16
        %v492 = vpop.permute.xlu0 %491
        %v494 = vmul.f32 %v360, %v492
        %496 = vrot.lane.b32.xlu0 %v494, 112
        %v497 = vpop.permute.xlu0 %496
        %v498 = vsel %vm436, %v497, 0
        %500 = vmatpush.xpose.msra.mxu0 0.0
        %501 = vmatpush.xpose.msra.mxu0 0.0
        %502 = vmatpush.xpose.msra.mxu0 0.0
        %503 = vmatpush.xpose.msra.mxu0 0.0
        %504 = vmatpush.xpose.msra.mxu0 0.0
        %505 = vmatpush.xpose.msra.mxu0 0.0
        %506 = vmatpush.xpose.msra.mxu0 0.0
        %507 = vmatpush.xpose.msra.mxu0 0.0
        %508 = vmatpush.xpose.msra.mxu0 0.0
        %509 = vmatpush.xpose.msra.mxu0 0.0
        %510 = vmatpush.xpose.msra.mxu0 0.0
        %511 = vmatpush.xpose.msra.mxu0 0.0
        %512 = vmatpush.xpose.msra.mxu0 0.0
        %513 = vmatpush.xpose.msra.mxu0 0.0
        %514 = vmatpush.xpose.msra.mxu0 0.0
        %515 = vmatpush.xpose.msra.mxu0 %v440
        %516 = vmatmul.f32.gmra.mxu0 %v498
        %v517 = vpop.f32.mrf.mxu0
        %v518 = vadd.f32 0.0, %v517
        %519 = vdwg.mxu0
        %v520 = vmul.f32 %v518, %v395
        %v522 = vsel %vm400, %v520, 0
        %524 = vmatpush.msra.mxu0 0.0
        %525 = vmatpush.msra.mxu0 0.0
        %526 = vmatpush.msra.mxu0 0.0
        %527 = vmatpush.msra.mxu0 0.0
        %528 = vmatpush.msra.mxu0 0.0
        %529 = vmatpush.msra.mxu0 0.0
        %530 = vmatpush.msra.mxu0 0.0
        %531 = vmatpush.msra.mxu0 0.0
        %532 = vmatpush.msra.mxu0 0.0
        %533 = vmatpush.msra.mxu0 0.0
        %534 = vmatpush.msra.mxu0 0.0
        %535 = vmatpush.msra.mxu0 0.0
        %536 = vmatpush.msra.mxu0 0.0
        %537 = vmatpush.msra.mxu0 0.0
        %538 = vmatpush.msra.mxu0 0.0
        %539 = vmatpush.msra.mxu0 %v465
        %540 = vmatmul.f32.gmra.mxu0 %v522
        %v541 = vpop.f32.mrf.mxu0
        %v542 = vadd.f32 0.0, %v541
        %543 = vdwg.mxu0
        %544 = vrot.lane.b32.xlu0 %v494, 96
        %v545 = vpop.permute.xlu0 %544
        %546 = vrot.lane.b32.xlu0 %v431, 48
        %v547 = vpop.permute.xlu0 %546
        %v548 = vsel %vm436, %v545, 0
        %v550 = vsel %vm436, %v547, 0
        %552 = vmatpush.xpose.msra.mxu0 0.0
        %553 = vmatpush.xpose.msra.mxu0 0.0
        %554 = vmatpush.xpose.msra.mxu0 0.0
        %555 = vmatpush.xpose.msra.mxu0 0.0
        %556 = vmatpush.xpose.msra.mxu0 0.0
        %557 = vmatpush.xpose.msra.mxu0 0.0
        %558 = vmatpush.xpose.msra.mxu0 0.0
        %559 = vmatpush.xpose.msra.mxu0 0.0
        %560 = vmatpush.xpose.msra.mxu0 0.0
        %561 = vmatpush.xpose.msra.mxu0 0.0
        %562 = vmatpush.xpose.msra.mxu0 0.0
        %563 = vmatpush.xpose.msra.mxu0 0.0
        %564 = vmatpush.xpose.msra.mxu0 0.0
        %565 = vmatpush.xpose.msra.mxu0 0.0
        %566 = vmatpush.xpose.msra.mxu0 0.0
        %567 = vmatpush.xpose.msra.mxu0 %v550
        %568 = vmatmul.f32.gmra.mxu0 %v548
        %v569 = vpop.f32.mrf.mxu0
        %v570 = vadd.f32 0.0, %v569
        %571 = vdwg.mxu0
        %v572 = vmul.f32 %v570, %v395
        %573 = vrot.lane.b32.xlu0 %v357, 24
        %v574 = vpop.permute.xlu0 %573
        %v577 = vsel %vm400, %v572, 0
        %579 = vmatpush.msra.mxu0 0.0
        %580 = vmatpush.msra.mxu0 0.0
        %581 = vmatpush.msra.mxu0 0.0
        %582 = vmatpush.msra.mxu0 0.0
        %583 = vmatpush.msra.mxu0 0.0
        %584 = vmatpush.msra.mxu0 0.0
        %585 = vmatpush.msra.mxu0 0.0
        %586 = vmatpush.msra.mxu0 0.0
        %587 = vmatpush.msra.mxu0 0.0
        %588 = vmatpush.msra.mxu0 0.0
        %589 = vmatpush.msra.mxu0 0.0
        %590 = vmatpush.msra.mxu0 0.0
        %591 = vmatpush.msra.mxu0 0.0
        %592 = vmatpush.msra.mxu0 0.0
        %593 = vmatpush.msra.mxu0 0.0
        %594 = vmatpush.msra.mxu0 %v574
        %595 = vmatmul.f32.gmra.mxu0 %v577
        %v596 = vpop.f32.mrf.mxu0
        %v597 = vadd.f32 0.0, %v596
        %598 = vdwg.mxu0
        %599 = vrot.lane.b32.xlu0 %v425, 32
        %v600 = vpop.permute.xlu0 %599
        %v602 = vmul.f32 %v360, %v600
        %604 = vrot.lane.b32.xlu0 %v602, 80
        %v605 = vpop.permute.xlu0 %604
        %v606 = vsel %vm436, %v605, 0
        %608 = vmatpush.xpose.msra.mxu0 0.0
        %609 = vmatpush.xpose.msra.mxu0 0.0
        %610 = vmatpush.xpose.msra.mxu0 0.0
        %611 = vmatpush.xpose.msra.mxu0 0.0
        %612 = vmatpush.xpose.msra.mxu0 0.0
        %613 = vmatpush.xpose.msra.mxu0 0.0
        %614 = vmatpush.xpose.msra.mxu0 0.0
        %615 = vmatpush.xpose.msra.mxu0 0.0
        %616 = vmatpush.xpose.msra.mxu0 0.0
        %617 = vmatpush.xpose.msra.mxu0 0.0
        %618 = vmatpush.xpose.msra.mxu0 0.0
        %619 = vmatpush.xpose.msra.mxu0 0.0
        %620 = vmatpush.xpose.msra.mxu0 0.0
        %621 = vmatpush.xpose.msra.mxu0 0.0
        %622 = vmatpush.xpose.msra.mxu0 0.0
        %623 = vmatpush.xpose.msra.mxu0 %v550
        %624 = vmatmul.f32.gmra.mxu0 %v606
        %v625 = vpop.f32.mrf.mxu0
        %v626 = vadd.f32 0.0, %v625
        %627 = vdwg.mxu0
        %v628 = vmul.f32 %v626, %v395
        %v630 = vsel %vm400, %v628, 0
        %632 = vmatpush.msra.mxu0 0.0
        %633 = vmatpush.msra.mxu0 0.0
        %634 = vmatpush.msra.mxu0 0.0
        %635 = vmatpush.msra.mxu0 0.0
        %636 = vmatpush.msra.mxu0 0.0
        %637 = vmatpush.msra.mxu0 0.0
        %638 = vmatpush.msra.mxu0 0.0
        %639 = vmatpush.msra.mxu0 0.0
        %640 = vmatpush.msra.mxu0 0.0
        %641 = vmatpush.msra.mxu0 0.0
        %642 = vmatpush.msra.mxu0 0.0
        %643 = vmatpush.msra.mxu0 0.0
        %644 = vmatpush.msra.mxu0 0.0
        %645 = vmatpush.msra.mxu0 0.0
        %646 = vmatpush.msra.mxu0 0.0
        %647 = vmatpush.msra.mxu0 %v574
        %648 = vmatmul.f32.gmra.mxu0 %v630
        %v649 = vpop.f32.mrf.mxu0
        %v650 = vadd.f32 0.0, %v649
        %651 = vdwg.mxu0
        %653 = vrot.lane.b32.xlu0 %v542, 8
        %v654 = vpop.permute.xlu0 %653
        %657 = vrot.lane.b32.xlu0 %v597, 16
        %v658 = vpop.permute.xlu0 %657
        %661 = vrot.lane.b32.xlu0 %v650, 24
        %v662 = vpop.permute.xlu0 %661
        %v664 = vsel %vm400, %v488, %v654
        %v665 = vsel %vm436, %v664, %v658
        %vm666 = vcmask 195584
        %v667 = vsel %vm666, %v665, %v662
        %v668 = vmul.f32 %v667, %v667
        %v669 = vsel %vm303, %v668, 0.0
        %670 = vadd.xlane.f32.xlu0 %v669
        %v671 = vpop.xlane.xlu0 %670
        %v672 = vmul.f32 %v671, %v313
        %v673 = vadd.f32 %v672, 1e-06
        %v674 = vrsqrt.pop %v673
        %v675 = vmul.f32 %v674, %v673
        %v676 = vmul.f32 %v675, %v674
        %v677 = vmul.f32 0.5, %v676
        %v678 = vsub.f32 1.5, %v677
        %v679 = vmul.f32 %v674, %v678
        %vm680 = vweird.f32 %v673
        %vm681 = vweird.f32 %v674
        %vm682 = vmor %vm680, %vm681
        %v683 = vsel %vm682, %v674, %v679
        %v684 = vmul.f32 %v667, %v683
        %v685 = vld [vmem:[%s3] sm:$0x1]
        %v687 = vperm.slane %v685, 0
        %v689 = vmul.f32 %v684, %v687
        %v690 = vld [vmem:[%s4] sm:$0xff]
        %v691 = vld [vmem:[%s4 + $0x8] sm:$0xff]
        %v692 = vld [vmem:[%s4 + $0x10] sm:$0xff]
        %v693 = vld [vmem:[%s4 + $0x18] sm:$0xff]
        %v695 = vsel %vm303, %v689, 0
        %697 = vmatpush.msra.mxu0 0.0
        %698 = vmatpush.msra.mxu0 0.0
        %699 = vmatpush.msra.mxu0 0.0
        %700 = vmatpush.msra.mxu0 0.0
        %701 = vmatpush.msra.mxu0 0.0
        %702 = vmatpush.msra.mxu0 0.0
        %703 = vmatpush.msra.mxu0 0.0
        %704 = vmatpush.msra.mxu0 0.0
        %705 = vmatpush.msra.mxu0 0.0
        %706 = vmatpush.msra.mxu0 0.0
        %707 = vmatpush.msra.mxu0 0.0
        %708 = vmatpush.msra.mxu0 0.0
        %709 = vmatpush.msra.mxu0 %v693
        %710 = vmatpush.msra.mxu0 %v692
        %711 = vmatpush.msra.mxu0 %v691
        %712 = vmatpush.msra.mxu0 %v690
        %713 = vmatmul.f32.gmra.mxu0 %v695
        %v714 = vpop.f32.mrf.mxu0
        %v715 = vadd.f32 %v301, %v714
        %716 = vdwg.mxu0
        %v717 = vmul.f32 %v715, %v715
        %v718 = vsel %vm303, %v717, 0.0
        %719 = vadd.xlane.f32.xlu0 %v718
        %v720 = vpop.xlane.xlu0 %719
        %v721 = vmul.f32 %v720, %v313
        %v722 = vadd.f32 %v721, 1e-06
        %v723 = vrsqrt.pop %v722
        %v724 = vmul.f32 %v723, %v722
        %v725 = vmul.f32 %v724, %v723
        %v726 = vmul.f32 0.5, %v725
        %v727 = vsub.f32 1.5, %v726
        %v728 = vmul.f32 %v723, %v727
        %vm729 = vweird.f32 %v722
        %vm730 = vweird.f32 %v723
        %vm731 = vmor %vm729, %vm730
        %v732 = vsel %vm731, %v723, %v728
        %v733 = vmul.f32 %v715, %v732
        %v734 = vld [vmem:[%s5] sm:$0x1]
        %v736 = vperm.slane %v734, 0
        %v738 = vmul.f32 %v733, %v736
        %v739 = vld [vmem:[%s6] sm:$0xff]
        %v740 = vld [vmem:[%s6 + $0x8] sm:$0xff]
        %v741 = vld [vmem:[%s6 + $0x10] sm:$0xff]
        %v742 = vld [vmem:[%s6 + $0x18] sm:$0xff]
        %v744 = vsel %vm303, %v738, 0
        %746 = vmatpush.msra.mxu0 0.0
        %747 = vmatpush.msra.mxu0 0.0
        %748 = vmatpush.msra.mxu0 0.0
        %749 = vmatpush.msra.mxu0 0.0
        %750 = vmatpush.msra.mxu0 0.0
        %751 = vmatpush.msra.mxu0 0.0
        %752 = vmatpush.msra.mxu0 0.0
        %753 = vmatpush.msra.mxu0 0.0
        %754 = vmatpush.msra.mxu0 0.0
        %755 = vmatpush.msra.mxu0 0.0
        %756 = vmatpush.msra.mxu0 0.0
        %757 = vmatpush.msra.mxu0 0.0
        %758 = vmatpush.msra.mxu0 %v742
        %759 = vmatpush.msra.mxu0 %v741
        %760 = vmatpush.msra.mxu0 %v740
        %761 = vmatpush.msra.mxu0 %v739
        %762 = vmatmul.f32.gmra.mxu0 %v744
        %v763 = vpop.f32.mrf.mxu0
        %v764 = vadd.f32 0.0, %v763
        %765 = vdwg.mxu0
        %v766 = vxor.u32 %v764, 2147483648
        %v767 = vmul.f32 %v766, 1.442695
        %v768 = vpow.pop %v767
        %v769 = vadd.f32 %v768, 1.0
        %v770 = vrcp.pop %v769
        %v771 = vmul.f32 %v769, %v770
        %v772 = vsub.f32 1.0, %v771
        %v773 = vmul.f32 %v770, %v772
        %v774 = vadd.f32 %v770, %v773
        %vm775 = vweird.f32 %v769
        %vm776 = vweird.f32 %v770
        %vm777 = vmor %vm775, %vm776
        %v778 = vsel %vm777, %v770, %v774
        %v779 = vand.u32 2147483647, %v769
        %vm780 = vcmp.eq.f32.partialorder %v779, 8.507059e+37
        %v781 = vand.u32 %v769, 2147483648
        %v782 = vor.u32 1.1754944e-38, %v781
        %v783 = vsel %vm780, %v782, %v778
        %v784 = vmul.f32 1.0, %v783
        %v785 = vmul.f32 %v764, %v784
        %787 = vrot.lane.b32.xlu0 %v764, 64
        %v788 = vpop.permute.xlu0 %787
        %v790 = vmul.f32 %v785, %v788
        %v791 = vld [vmem:[%s7] sm:$0xff]
        %v792 = vld [vmem:[%s7 + $0x8] sm:$0xff]
        %v793 = vld [vmem:[%s7 + $0x10] sm:$0xff]
        %v794 = vld [vmem:[%s7 + $0x18] sm:$0xff]
        %v795 = vld [vmem:[%s7 + $0x20] sm:$0xff]
        %v796 = vld [vmem:[%s7 + $0x28] sm:$0xff]
        %v797 = vld [vmem:[%s7 + $0x30] sm:$0xff]
        %v798 = vld [vmem:[%s7 + $0x38] sm:$0xff]
        %vm799 = vcmask 523264
        %v801 = vsel %vm799, %v790, 0
        %803 = vmatpush.msra.mxu0 0.0
        %804 = vmatpush.msra.mxu0 0.0
        %805 = vmatpush.msra.mxu0 0.0
        %806 = vmatpush.msra.mxu0 0.0
        %807 = vmatpush.msra.mxu0 0.0
        %808 = vmatpush.msra.mxu0 0.0
        %809 = vmatpush.msra.mxu0 0.0
        %810 = vmatpush.msra.mxu0 0.0
        %811 = vmatpush.msra.mxu0 %v798
        %812 = vmatpush.msra.mxu0 %v797
        %813 = vmatpush.msra.mxu0 %v796
        %814 = vmatpush.msra.mxu0 %v795
        %815 = vmatpush.msra.mxu0 %v794
        %816 = vmatpush.msra.mxu0 %v793
        %817 = vmatpush.msra.mxu0 %v792
        %818 = vmatpush.msra.mxu0 %v791
        %819 = vmatmul.f32.gmra.mxu0 %v801
        %v820 = vpop.f32.mrf.mxu0
        %v821 = vadd.f32 0.0, %v820
        %822 = vdwg.mxu0
        %v823 = vadd.f32 %v715, %v821
        %824 = vst.msk [vmem:[%s296] sm:$0xff] %vm303, %v823
        %s825 = sand.u32 %s203, 1
        %s826 = scalar_lea.sflag [#allocation3], %s825
        %s827 = sand.u32 %s203, 1
        %s828 = smul.addr %s827, 8
        %s829 = scalar_lea.vmem [#allocation2], %s828
        // Predicated region
        $region53: #{hgrn2_block_forward.1} parent=51 // pred_check
          %p830 = pneg %p213
        $region54: #{hgrn2_block_forward.1} parent=51 // pred_check_branch
          %832 = sbr.rel (%p830) target = $region56
        $region55: #{hgrn2_block_forward.1} parent=51 // pred_region
          %834 = vsyncadd %s826, 0
          %s835 = smul.addr %s22, 8
          %s836 = scalar_lea.hbm %s8, %s835
          %s838 = sshll.u32 %s829, 4
          %s839 = int_to_ptr.vmem [resolvable:$true] %s838
          %s840 = sshll.u32 %s836, 4
          %s841 = int_to_ptr.hbm [resolvable:$true] %s840
          %843 = dma.vmem_to_hbm [thread:$0]  %s839, 128, %s841, %s826
        $region56: #{hgrn2_block_forward.1} parent=51 // pred_fallthru
          _
      $region52: #{hgrn2_block_forward.1} parent=5 // pred_fallthru
        _
      %p844 = scmp.le.s32.totalorder 2, %s17
      // Predicated region
      $region57: #{hgrn2_block_forward.1} parent=5 // pred_check
        %p845 = pneg %p844
      $region58: #{hgrn2_block_forward.1} parent=5 // pred_check_branch
        %847 = sbr.rel (%p845) target = $region60
      $region59: #{hgrn2_block_forward.1} parent=5 // pred_region
        %s848 = ssub.s32 %s17, 2
        // Predicated region
        $region61: #{hgrn2_block_forward.1} parent=59 // pred_check
          %p849 = pneg %p219
        $region62: #{hgrn2_block_forward.1} parent=59 // pred_check_branch
          %851 = sbr.rel (%p849) target = $region64
        $region63: #{hgrn2_block_forward.1} parent=59 // pred_region
          %s852 = sand.u32 %s204, 1
          %s853 = scalar_lea.sflag [#allocation3], %s852
          %s854 = sand.u32 %s204, 1
          %s855 = smul.addr %s854, 8
          %s856 = scalar_lea.vmem [#allocation2], %s855
          %858 = dma.done %s853, 128
        $region64: #{hgrn2_block_forward.1} parent=59 // pred_fallthru
          _
      $region60: #{hgrn2_block_forward.1} parent=5 // pred_fallthru
        _
    $region6: #{hgrn2_block_forward.1} parent=1 // loop_footer
      %s21 = sadd.s32 1, %s17
    $region7: #{hgrn2_block_forward.1} parent=1 // loop_footer_branch
      %16 = sbr.rel target = $region3
    $region8: #{hgrn2_block_forward.1} parent=1 // loop_exit
      _
    %859 = vsyncpa [#allocation3], 1
    %s860 = scalar_lea.sflag [#allocation3], 1
    %861 = vsyncpa %s860, 1

</llo_original>
